<compile_context>
chip_gen: v5e
topology: v5e:2x2
jax: 0.10.0
libtpu: 0.0.40
codegen_flags: <defaults>
</compile_context>

<pallas_src>
import functools

import jax
import jax.numpy as jnp
from jax.experimental import pallas as pl
from jax.experimental.pallas import tpu as pltpu


def _rnn_kernel(x_ref, h0_ref, w_ih_ref, w_hh_ref, b_h_ref,
                w_out_ref, b_out_ref, out_ref):
    """Elman RNN + Linear + ReLU, all time steps inside the kernel.

    x_ref   : (S, B, I)    input sequence (padded)
    h0_ref  : (B, H)       initial hidden state (padded)
    w_ih_ref: (I, H)       input->hidden weight (transposed vs torch, padded)
    w_hh_ref: (H, H)       hidden->hidden weight (transposed vs torch, padded)
    b_h_ref : (1, H)       combined bias b_ih + b_hh (padded)
    w_out_ref:(H, O)       output projection weight (transposed, padded)
    b_out_ref:(1, O)       output projection bias (padded)
    out_ref : (S*B, O)     per-step predictions (ReLU applied), lane-dense
    """
    S, B, I = x_ref.shape
    H = w_hh_ref.shape[0]

    # ---- hoisted input projection: one batched matmul + one bias add ----
    x_all = x_ref[...].reshape(S * B, I)                       # (S*B, I)
    xw = jnp.dot(x_all, w_ih_ref[...],
                 preferred_element_type=jnp.float32)           # (S*B, H)
    xw = xw + b_h_ref[...]                                     # broadcast once
    xw = xw.reshape(S, B, H)

    w_hh = w_hh_ref[...]

    # ---- recurrence: fully unrolled (S static & small) so the scheduler can
    #      interleave the MXU push of step t+1 with the tanh/adds of step t.
    #      Per-step critical path = one vmatmul + tanh. ----
    h = h0_ref[...]
    hs = []
    for t in range(S):
        h = jnp.tanh(xw[t] + jnp.dot(h, w_hh,
                                     preferred_element_type=jnp.float32))
        hs.append(h)

    # ---- head: one (S*B, H) @ (H, O) matmul + bias + ReLU, one bulk store ----
    h_all = jnp.concatenate(hs, axis=0)                        # (S*B, H)
    y = jnp.dot(h_all, w_out_ref[...],
                preferred_element_type=jnp.float32)            # (S*B, O)
    out_ref[...] = jnp.maximum(y + b_out_ref[...], 0.0)


def _round_up(n, m):
    return ((n + m - 1) // m) * m


@functools.partial(jax.jit, static_argnames=("pred_length",))
def rnn_forward(params, input_seq, hidden_cell, pred_length):
    """Mirrors RNN.forward(input_seq, batch_size, hidden_cell, pred_length)."""
    h0 = hidden_cell[0]            # hidden_cell = (h0, c0); RNN only uses h0
    h0 = h0[0]                     # (1, B, H) -> (B, H)
    S = input_seq.shape[0]
    B = h0.shape[0]
    x = input_seq.reshape(S, B, -1).astype(jnp.float32)   # == .view(len, B, -1)
    I = x.shape[-1]
    H = params["w_hh"].shape[0]
    O = params["w_out"].shape[1]

    # Pad to TPU-friendly tiles: sublane (batch) multiple of 8, lane (feature)
    # multiples of 128.  Zero padding is exact for this computation.
    Bp = max(_round_up(B, 8), 8)
    Ip = max(_round_up(I, 128), 128)
    Hp = max(_round_up(H, 128), 128)
    Op = max(_round_up(O, 128), 128)

    xp = jnp.zeros((S, Bp, Ip), jnp.float32).at[:, :B, :I].set(x)
    h0p = jnp.zeros((Bp, Hp), jnp.float32).at[:B, :H].set(h0.astype(jnp.float32))
    w_ih = jnp.zeros((Ip, Hp), jnp.float32).at[:I, :H].set(params["w_ih"])
    w_hh = jnp.zeros((Hp, Hp), jnp.float32).at[:H, :H].set(params["w_hh"])
    b_h = jnp.zeros((1, Hp), jnp.float32).at[:, :H].set(params["b_h"])
    w_out = jnp.zeros((Hp, Op), jnp.float32).at[:H, :O].set(params["w_out"])
    b_out = jnp.zeros((1, Op), jnp.float32).at[:, :O].set(params["b_out"])

    y = pl.pallas_call(
        _rnn_kernel,
        out_shape=jax.ShapeDtypeStruct((S * Bp, Op), jnp.float32),
        in_specs=[
            pl.BlockSpec(memory_space=pltpu.VMEM),   # x
            pl.BlockSpec(memory_space=pltpu.VMEM),   # h0
            pl.BlockSpec(memory_space=pltpu.VMEM),   # w_ih
            pl.BlockSpec(memory_space=pltpu.VMEM),   # w_hh
            pl.BlockSpec(memory_space=pltpu.VMEM),   # b_h
            pl.BlockSpec(memory_space=pltpu.VMEM),   # w_out
            pl.BlockSpec(memory_space=pltpu.VMEM),   # b_out
        ],
        out_specs=pl.BlockSpec(memory_space=pltpu.VMEM),
    )(xp, h0p, w_ih, w_hh, b_h, w_out, b_out)

    # Strip padding (free layout plumbing in the wrapper) and keep last steps:
    # predictions.reshape(len, B, O)[-pred_length:]
    preds = y.reshape(S, Bp, Op)[:, :B, :O]
    return preds[-pred_length:]


def _reference_forward(params, input_seq, hidden_cell, pred_length):
    """Pure-JAX reference matching PyTorch semantics (tanh RNN + Linear + ReLU)."""
    h = hidden_cell[0][0]
    S = input_seq.shape[0]
    B = h.shape[0]
    x = input_seq.reshape(S, B, -1).astype(jnp.float32)
    outs = []
    for t in range(S):
        h = jnp.tanh(x[t] @ params["w_ih"] + h @ params["w_hh"] + params["b_h"])
        outs.append(jnp.maximum(h @ params["w_out"] + params["b_out"], 0.0))
    preds = jnp.stack(outs, axis=0)
    return preds[-pred_length:]


def init_params(key, input_size, hidden_size, output_size):
    """Deterministic init mimicking PyTorch's U(-1/sqrt(H), 1/sqrt(H))."""
    ks = jax.random.split(key, 6)
    bound = 1.0 / jnp.sqrt(hidden_size)
    w_ih = jax.random.uniform(ks[0], (input_size, hidden_size), jnp.float32,
                              -bound, bound)
    w_hh = jax.random.uniform(ks[1], (hidden_size, hidden_size), jnp.float32,
                              -bound, bound)
    b_ih = jax.random.uniform(ks[2], (1, hidden_size), jnp.float32, -bound, bound)
    b_hh = jax.random.uniform(ks[3], (1, hidden_size), jnp.float32, -bound, bound)
    w_out = jax.random.uniform(ks[4], (hidden_size, output_size), jnp.float32,
                               -bound, bound)
    b_out = jax.random.uniform(ks[5], (1, output_size), jnp.float32, -bound, bound)
    return {
        "w_ih": w_ih,
        "w_hh": w_hh,
        "b_h": b_ih + b_hh,      # nn.RNN adds both biases; fuse them
        "w_out": w_out,
        "b_out": b_out,
    }


if __name__ == "__main__":
    # Small shapes consistent with the module's forward.
    seq_len = 8
    batch_size = 2
    input_size = 1
    hidden_size = 32
    output_size = 1
    pred_length = 4

    key = jax.random.PRNGKey(0)
    k_param, k_x, k_h = jax.random.split(key, 3)

    params = init_params(k_param, input_size, hidden_size, output_size)

    # input_seq: (seq_len, batch, input_size) -> .view(len, batch, -1) is identity
    input_seq = jax.random.normal(k_x, (seq_len, batch_size, input_size),
                                  jnp.float32)
    # hidden_cell passed LSTM-style as (h0, c0); forward uses only hidden_cell[0]
    h0 = jax.random.normal(k_h, (1, batch_size, hidden_size), jnp.float32)
    c0 = jnp.zeros((1, batch_size, hidden_size), jnp.float32)
    hidden_cell = (h0, c0)

    out = rnn_forward(params, input_seq, hidden_cell, pred_length)
    out = jax.block_until_ready(out)

    ref = _reference_forward(params, input_seq, hidden_cell, pred_length)
    assert out.shape == (pred_length, batch_size, output_size), out.shape
    assert jnp.allclose(out, ref, atol=1e-5, rtol=1e-5), \
        f"max abs diff {jnp.max(jnp.abs(out - ref))}"

    print("KERNEL_OK")
</pallas_src>

<mosaic_0001>
module attributes {stable_mosaic.version = 11 : i64} {
  func.func @_rnn_kernel(%arg0: memref<8x8x128xf32, #tpu.memory_space<vmem>>, %arg1: memref<8x128xf32, #tpu.memory_space<vmem>>, %arg2: memref<128x128xf32, #tpu.memory_space<vmem>>, %arg3: memref<128x128xf32, #tpu.memory_space<vmem>>, %arg4: memref<1x128xf32, #tpu.memory_space<vmem>>, %arg5: memref<128x128xf32, #tpu.memory_space<vmem>>, %arg6: memref<1x128xf32, #tpu.memory_space<vmem>>, %arg7: memref<64x128xf32, #tpu.memory_space<vmem>>) attributes {dimension_semantics = [], scalar_prefetch = 0 : i64, scratch_operands = 0 : i64, tpu.core_type = #tpu.core_type<tc>} {
    %c0 = arith.constant 0 : index
    %c0_0 = arith.constant 0 : index
    %c0_1 = arith.constant 0 : index
    %0 = vector.load %arg0[%c0, %c0_0, %c0_1] : memref<8x8x128xf32, #tpu.memory_space<vmem>>, vector<8x8x128xf32>
    %1 = vector.shape_cast %0 : vector<8x8x128xf32> to vector<64x128xf32>
    %c0_2 = arith.constant 0 : index
    %c0_3 = arith.constant 0 : index
    %2 = vector.load %arg2[%c0_2, %c0_3] : memref<128x128xf32, #tpu.memory_space<vmem>>, vector<128x128xf32>
    %cst = arith.constant dense<0.000000e+00> : vector<64x128xf32>
    %3 = tpu.matmul %1, %2, %cst {dimension_numbers = #tpu.dot_dimension_numbers<[1], [0], [0], [1], [0, 0, 1, 1], [], []>} : vector<64x128xf32>, vector<128x128xf32>, vector<64x128xf32> -> vector<64x128xf32>
    %c0_4 = arith.constant 0 : index
    %c0_5 = arith.constant 0 : index
    %4 = vector.load %arg4[%c0_4, %c0_5] : memref<1x128xf32, #tpu.memory_space<vmem>>, vector<1x128xf32>
    %5 = vector.broadcast %4 : vector<1x128xf32> to vector<64x128xf32>
    %6 = arith.addf %3, %5 : vector<64x128xf32>
    %7 = vector.shape_cast %6 : vector<64x128xf32> to vector<8x8x128xf32>
    %c0_6 = arith.constant 0 : index
    %c0_7 = arith.constant 0 : index
    %8 = vector.load %arg3[%c0_6, %c0_7] : memref<128x128xf32, #tpu.memory_space<vmem>>, vector<128x128xf32>
    %c0_8 = arith.constant 0 : index
    %c0_9 = arith.constant 0 : index
    %9 = vector.load %arg1[%c0_8, %c0_9] : memref<8x128xf32, #tpu.memory_space<vmem>>, vector<8x128xf32>
    %10 = vector.extract_strided_slice %7 {offsets = [0, 0, 0], sizes = [1, 8, 128], strides = [1, 1, 1]} : vector<8x8x128xf32> to vector<1x8x128xf32>
    %11 = vector.shape_cast %10 : vector<1x8x128xf32> to vector<8x128xf32>
    %cst_10 = arith.constant dense<0.000000e+00> : vector<8x128xf32>
    %12 = tpu.matmul %9, %8, %cst_10 {dimension_numbers = #tpu.dot_dimension_numbers<[1], [0], [0], [1], [0, 0, 1, 1], [], []>} : vector<8x128xf32>, vector<128x128xf32>, vector<8x128xf32> -> vector<8x128xf32>
    %13 = arith.addf %11, %12 : vector<8x128xf32>
    %14 = math.tanh %13 : vector<8x128xf32>
    %15 = vector.extract_strided_slice %7 {offsets = [1, 0, 0], sizes = [1, 8, 128], strides = [1, 1, 1]} : vector<8x8x128xf32> to vector<1x8x128xf32>
    %16 = vector.shape_cast %15 : vector<1x8x128xf32> to vector<8x128xf32>
    %cst_11 = arith.constant dense<0.000000e+00> : vector<8x128xf32>
    %17 = tpu.matmul %14, %8, %cst_11 {dimension_numbers = #tpu.dot_dimension_numbers<[1], [0], [0], [1], [0, 0, 1, 1], [], []>} : vector<8x128xf32>, vector<128x128xf32>, vector<8x128xf32> -> vector<8x128xf32>
    %18 = arith.addf %16, %17 : vector<8x128xf32>
    %19 = math.tanh %18 : vector<8x128xf32>
    %20 = vector.extract_strided_slice %7 {offsets = [2, 0, 0], sizes = [1, 8, 128], strides = [1, 1, 1]} : vector<8x8x128xf32> to vector<1x8x128xf32>
    %21 = vector.shape_cast %20 : vector<1x8x128xf32> to vector<8x128xf32>
    %cst_12 = arith.constant dense<0.000000e+00> : vector<8x128xf32>
    %22 = tpu.matmul %19, %8, %cst_12 {dimension_numbers = #tpu.dot_dimension_numbers<[1], [0], [0], [1], [0, 0, 1, 1], [], []>} : vector<8x128xf32>, vector<128x128xf32>, vector<8x128xf32> -> vector<8x128xf32>
    %23 = arith.addf %21, %22 : vector<8x128xf32>
    %24 = math.tanh %23 : vector<8x128xf32>
    %25 = vector.extract_strided_slice %7 {offsets = [3, 0, 0], sizes = [1, 8, 128], strides = [1, 1, 1]} : vector<8x8x128xf32> to vector<1x8x128xf32>
    %26 = vector.shape_cast %25 : vector<1x8x128xf32> to vector<8x128xf32>
    %cst_13 = arith.constant dense<0.000000e+00> : vector<8x128xf32>
    %27 = tpu.matmul %24, %8, %cst_13 {dimension_numbers = #tpu.dot_dimension_numbers<[1], [0], [0], [1], [0, 0, 1, 1], [], []>} : vector<8x128xf32>, vector<128x128xf32>, vector<8x128xf32> -> vector<8x128xf32>
    %28 = arith.addf %26, %27 : vector<8x128xf32>
    %29 = math.tanh %28 : vector<8x128xf32>
    %30 = vector.extract_strided_slice %7 {offsets = [4, 0, 0], sizes = [1, 8, 128], strides = [1, 1, 1]} : vector<8x8x128xf32> to vector<1x8x128xf32>
    %31 = vector.shape_cast %30 : vector<1x8x128xf32> to vector<8x128xf32>
    %cst_14 = arith.constant dense<0.000000e+00> : vector<8x128xf32>
    %32 = tpu.matmul %29, %8, %cst_14 {dimension_numbers = #tpu.dot_dimension_numbers<[1], [0], [0], [1], [0, 0, 1, 1], [], []>} : vector<8x128xf32>, vector<128x128xf32>, vector<8x128xf32> -> vector<8x128xf32>
    %33 = arith.addf %31, %32 : vector<8x128xf32>
    %34 = math.tanh %33 : vector<8x128xf32>
    %35 = vector.extract_strided_slice %7 {offsets = [5, 0, 0], sizes = [1, 8, 128], strides = [1, 1, 1]} : vector<8x8x128xf32> to vector<1x8x128xf32>
    %36 = vector.shape_cast %35 : vector<1x8x128xf32> to vector<8x128xf32>
    %cst_15 = arith.constant dense<0.000000e+00> : vector<8x128xf32>
    %37 = tpu.matmul %34, %8, %cst_15 {dimension_numbers = #tpu.dot_dimension_numbers<[1], [0], [0], [1], [0, 0, 1, 1], [], []>} : vector<8x128xf32>, vector<128x128xf32>, vector<8x128xf32> -> vector<8x128xf32>
    %38 = arith.addf %36, %37 : vector<8x128xf32>
    %39 = math.tanh %38 : vector<8x128xf32>
    %40 = vector.extract_strided_slice %7 {offsets = [6, 0, 0], sizes = [1, 8, 128], strides = [1, 1, 1]} : vector<8x8x128xf32> to vector<1x8x128xf32>
    %41 = vector.shape_cast %40 : vector<1x8x128xf32> to vector<8x128xf32>
    %cst_16 = arith.constant dense<0.000000e+00> : vector<8x128xf32>
    %42 = tpu.matmul %39, %8, %cst_16 {dimension_numbers = #tpu.dot_dimension_numbers<[1], [0], [0], [1], [0, 0, 1, 1], [], []>} : vector<8x128xf32>, vector<128x128xf32>, vector<8x128xf32> -> vector<8x128xf32>
    %43 = arith.addf %41, %42 : vector<8x128xf32>
    %44 = math.tanh %43 : vector<8x128xf32>
    %45 = vector.extract_strided_slice %7 {offsets = [7, 0, 0], sizes = [1, 8, 128], strides = [1, 1, 1]} : vector<8x8x128xf32> to vector<1x8x128xf32>
    %46 = vector.shape_cast %45 : vector<1x8x128xf32> to vector<8x128xf32>
    %cst_17 = arith.constant dense<0.000000e+00> : vector<8x128xf32>
    %47 = tpu.matmul %44, %8, %cst_17 {dimension_numbers = #tpu.dot_dimension_numbers<[1], [0], [0], [1], [0, 0, 1, 1], [], []>} : vector<8x128xf32>, vector<128x128xf32>, vector<8x128xf32> -> vector<8x128xf32>
    %48 = arith.addf %46, %47 : vector<8x128xf32>
    %49 = math.tanh %48 : vector<8x128xf32>
    %50 = tpu.concatenate %14, %19, %24, %29, %34, %39, %44, %49 in 0 : vector<8x128xf32>, vector<8x128xf32>, vector<8x128xf32>, vector<8x128xf32>, vector<8x128xf32>, vector<8x128xf32>, vector<8x128xf32>, vector<8x128xf32> -> vector<64x128xf32>
    %c0_18 = arith.constant 0 : index
    %c0_19 = arith.constant 0 : index
    %51 = vector.load %arg5[%c0_18, %c0_19] : memref<128x128xf32, #tpu.memory_space<vmem>>, vector<128x128xf32>
    %cst_20 = arith.constant dense<0.000000e+00> : vector<64x128xf32>
    %52 = tpu.matmul %50, %51, %cst_20 {dimension_numbers = #tpu.dot_dimension_numbers<[1], [0], [0], [1], [0, 0, 1, 1], [], []>} : vector<64x128xf32>, vector<128x128xf32>, vector<64x128xf32> -> vector<64x128xf32>
    %c0_21 = arith.constant 0 : index
    %c0_22 = arith.constant 0 : index
    %53 = vector.load %arg6[%c0_21, %c0_22] : memref<1x128xf32, #tpu.memory_space<vmem>>, vector<1x128xf32>
    %54 = vector.broadcast %53 : vector<1x128xf32> to vector<64x128xf32>
    %55 = arith.addf %52, %54 : vector<64x128xf32>
    %cst_23 = arith.constant 0.000000e+00 : f32
    %56 = vector.broadcast %cst_23 : f32 to vector<64x128xf32>
    %57 = arith.maximumf %55, %56 : vector<64x128xf32>
    %c0_24 = arith.constant 0 : index
    %c0_25 = arith.constant 0 : index
    %58 = vector.load %arg7[%c0_24, %c0_25] : memref<64x128xf32, #tpu.memory_space<vmem>>, vector<64x128xf32>
    tpu.vector_store %arg7[%c0_24, %c0_25], %57 {strides = array<i32>} : memref<64x128xf32, #tpu.memory_space<vmem>>, vector<64x128xf32>,
    return
  }
}

</mosaic_0001>

<llo_original>
// kernel: rnn_forward.1
$region0: #{rnn_forward.1}
  #allocation0 [shape = 'u32[]', space=smem, size = 0x4, offset = 0x4, fixed_abs, tag = 'smem constant byte address 0x4 - core index']
  #allocation1 [shape = 'u32[72,128]{1,0:T(1,128)}', space=vmem, size = 0x9000, scoped, tag = 'internal scratch']
  %s0 = inlined_call_operand.vmem [shape: f32[8,8,128], index: 0, kind: input, shape index: {}]
  %s1 = inlined_call_operand.vmem [shape: f32[8,128], index: 1, kind: input, shape index: {}]
  %s2 = inlined_call_operand.vmem [shape: f32[128,128], index: 2, kind: input, shape index: {}]
  %s3 = inlined_call_operand.vmem [shape: f32[128,128], index: 3, kind: input, shape index: {}]
  %s4 = inlined_call_operand.vmem [shape: f32[1,128], index: 4, kind: input, shape index: {}]
  %s5 = inlined_call_operand.vmem [shape: f32[128,128], index: 5, kind: input, shape index: {}]
  %s6 = inlined_call_operand.vmem [shape: f32[1,128], index: 6, kind: input, shape index: {}]
  %s7 = inlined_call_operand.vmem [shape: f32[64,128], index: 7, kind: output, shape index: {}]
  %s8 = sld [smem:[#allocation0]]
  $region38: #{rnn_forward.1} parent=0
    _
  %s10 = ssub.s32 1, %s8
  %s11 = scalar_select 0, %s10, %s8
  // Predicated region
  $region2: #{rnn_forward.1} parent=0 // pred_check
    _
  $region3: #{rnn_forward.1} parent=0 // pred_check_branch
    %13 = sbr.rel (0) target = $region5
  $region4: #{rnn_forward.1} parent=0 // pred_region
    _
  $region5: #{rnn_forward.1} parent=0 // pred_fallthru
    _
  // Predicated region
  $region6: #{rnn_forward.1} parent=0 // pred_check
    _
  $region7: #{rnn_forward.1} parent=0 // pred_check_branch
    %15 = sbr.rel (0) target = $region9
  $region8: #{rnn_forward.1} parent=0 // pred_region
    _
  $region9: #{rnn_forward.1} parent=0 // pred_fallthru
    _
  // Predicated region
  $region10: #{rnn_forward.1} parent=0 // pred_check
    _
  $region11: #{rnn_forward.1} parent=0 // pred_check_branch
    %17 = sbr.rel (0) target = $region13
  $region12: #{rnn_forward.1} parent=0 // pred_region
    _
  $region13: #{rnn_forward.1} parent=0 // pred_fallthru
    _
  // Predicated region
  $region14: #{rnn_forward.1} parent=0 // pred_check
    _
  $region15: #{rnn_forward.1} parent=0 // pred_check_branch
    %19 = sbr.rel (0) target = $region17
  $region16: #{rnn_forward.1} parent=0 // pred_region
    _
  $region17: #{rnn_forward.1} parent=0 // pred_fallthru
    _
  // Predicated region
  $region18: #{rnn_forward.1} parent=0 // pred_check
    _
  $region19: #{rnn_forward.1} parent=0 // pred_check_branch
    %21 = sbr.rel (0) target = $region21
  $region20: #{rnn_forward.1} parent=0 // pred_region
    _
  $region21: #{rnn_forward.1} parent=0 // pred_fallthru
    _
  // Predicated region
  $region22: #{rnn_forward.1} parent=0 // pred_check
    _
  $region23: #{rnn_forward.1} parent=0 // pred_check_branch
    %23 = sbr.rel (0) target = $region25
  $region24: #{rnn_forward.1} parent=0 // pred_region
    _
  $region25: #{rnn_forward.1} parent=0 // pred_fallthru
    _
  // Predicated region
  $region26: #{rnn_forward.1} parent=0 // pred_check
    _
  $region27: #{rnn_forward.1} parent=0 // pred_check_branch
    %25 = sbr.rel (0) target = $region29
  $region28: #{rnn_forward.1} parent=0 // pred_region
    _
  $region29: #{rnn_forward.1} parent=0 // pred_fallthru
    _
  %v26 = vld [vmem:[%s0] sm:$0xff]
  %v27 = vld [vmem:[%s0 + $0x8] sm:$0xff]
  %v28 = vld [vmem:[%s0 + $0x10] sm:$0xff]
  %v29 = vld [vmem:[%s0 + $0x18] sm:$0xff]
  %v30 = vld [vmem:[%s0 + $0x20] sm:$0xff]
  %v31 = vld [vmem:[%s0 + $0x28] sm:$0xff]
  %v32 = vld [vmem:[%s0 + $0x30] sm:$0xff]
  %v33 = vld [vmem:[%s0 + $0x38] sm:$0xff]
  %v34 = vld [vmem:[%s2] sm:$0xff]
  %v35 = vld [vmem:[%s2 + $0x8] sm:$0xff]
  %v36 = vld [vmem:[%s2 + $0x10] sm:$0xff]
  %v37 = vld [vmem:[%s2 + $0x18] sm:$0xff]
  %v38 = vld [vmem:[%s2 + $0x20] sm:$0xff]
  %v39 = vld [vmem:[%s2 + $0x28] sm:$0xff]
  %v40 = vld [vmem:[%s2 + $0x30] sm:$0xff]
  %v41 = vld [vmem:[%s2 + $0x38] sm:$0xff]
  %v42 = vld [vmem:[%s2 + $0x40] sm:$0xff]
  %v43 = vld [vmem:[%s2 + $0x48] sm:$0xff]
  %v44 = vld [vmem:[%s2 + $0x50] sm:$0xff]
  %v45 = vld [vmem:[%s2 + $0x58] sm:$0xff]
  %v46 = vld [vmem:[%s2 + $0x60] sm:$0xff]
  %v47 = vld [vmem:[%s2 + $0x68] sm:$0xff]
  %v48 = vld [vmem:[%s2 + $0x70] sm:$0xff]
  %v49 = vld [vmem:[%s2 + $0x78] sm:$0xff]
  %v50 = vld [vmem:[%s4] sm:$0x1]
  %v52 = vperm.slane %v50, 0
  %54 = vmatpush.msra.mxu0 %v49
  %55 = vmatpush.msra.mxu0 %v48
  %56 = vmatpush.msra.mxu0 %v47
  %57 = vmatpush.msra.mxu0 %v46
  %58 = vmatpush.msra.mxu0 %v45
  %59 = vmatpush.msra.mxu0 %v44
  %60 = vmatpush.msra.mxu0 %v43
  %61 = vmatpush.msra.mxu0 %v42
  %62 = vmatpush.msra.mxu0 %v41
  %63 = vmatpush.msra.mxu0 %v40
  %64 = vmatpush.msra.mxu0 %v39
  %65 = vmatpush.msra.mxu0 %v38
  %66 = vmatpush.msra.mxu0 %v37
  %67 = vmatpush.msra.mxu0 %v36
  %68 = vmatpush.msra.mxu0 %v35
  %69 = vmatpush.msra.mxu0 %v34
  %70 = vmatmul.f32.gmra.mxu0 %v26
  %v71 = vpop.f32.mrf.mxu0
  %v72 = vadd.f32 %v52, %v71
  %73 = vmatmul.f32.gmra.mxu0 %v27
  %v74 = vpop.f32.mrf.mxu0
  %v75 = vadd.f32 %v52, %v74
  %76 = vmatmul.f32.gmra.mxu0 %v28
  %v77 = vpop.f32.mrf.mxu0
  %v78 = vadd.f32 %v52, %v77
  %79 = vmatmul.f32.gmra.mxu0 %v29
  %v80 = vpop.f32.mrf.mxu0
  %v81 = vadd.f32 %v52, %v80
  %82 = vmatmul.f32.gmra.mxu0 %v30
  %v83 = vpop.f32.mrf.mxu0
  %v84 = vadd.f32 %v52, %v83
  %85 = vmatmul.f32.gmra.mxu0 %v31
  %v86 = vpop.f32.mrf.mxu0
  %v87 = vadd.f32 %v52, %v86
  %88 = vmatmul.f32.gmra.mxu0 %v32
  %v89 = vpop.f32.mrf.mxu0
  %v90 = vadd.f32 %v52, %v89
  %91 = vmatmul.f32.gmra.mxu0 %v33
  %v92 = vpop.f32.mrf.mxu0
  %v93 = vadd.f32 %v52, %v92
  %94 = vdwg.mxu0
  %v95 = vld [vmem:[%s3] sm:$0xff]
  %v96 = vld [vmem:[%s3 + $0x8] sm:$0xff]
  %v97 = vld [vmem:[%s3 + $0x10] sm:$0xff]
  %v98 = vld [vmem:[%s3 + $0x18] sm:$0xff]
  %v99 = vld [vmem:[%s3 + $0x20] sm:$0xff]
  %v100 = vld [vmem:[%s3 + $0x28] sm:$0xff]
  %v101 = vld [vmem:[%s3 + $0x30] sm:$0xff]
  %v102 = vld [vmem:[%s3 + $0x38] sm:$0xff]
  %v103 = vld [vmem:[%s3 + $0x40] sm:$0xff]
  %v104 = vld [vmem:[%s3 + $0x48] sm:$0xff]
  %v105 = vld [vmem:[%s3 + $0x50] sm:$0xff]
  %v106 = vld [vmem:[%s3 + $0x58] sm:$0xff]
  %v107 = vld [vmem:[%s3 + $0x60] sm:$0xff]
  %v108 = vld [vmem:[%s3 + $0x68] sm:$0xff]
  %v109 = vld [vmem:[%s3 + $0x70] sm:$0xff]
  %v110 = vld [vmem:[%s3 + $0x78] sm:$0xff]
  %v111 = vld [vmem:[%s1] sm:$0xff]
  %112 = vmatpush.msra.mxu0 %v110
  %113 = vmatpush.msra.mxu0 %v109
  %114 = vmatpush.msra.mxu0 %v108
  %115 = vmatpush.msra.mxu0 %v107
  %116 = vmatpush.msra.mxu0 %v106
  %117 = vmatpush.msra.mxu0 %v105
  %118 = vmatpush.msra.mxu0 %v104
  %119 = vmatpush.msra.mxu0 %v103
  %120 = vmatpush.msra.mxu0 %v102
  %121 = vmatpush.msra.mxu0 %v101
  %122 = vmatpush.msra.mxu0 %v100
  %123 = vmatpush.msra.mxu0 %v99
  %124 = vmatpush.msra.mxu0 %v98
  %125 = vmatpush.msra.mxu0 %v97
  %126 = vmatpush.msra.mxu0 %v96
  %127 = vmatpush.msra.mxu0 %v95
  %128 = vmatmul.f32.gmra.mxu0 %v111
  %v129 = vpop.f32.mrf.mxu0
  %v130 = vadd.f32 0.0, %v129
  %131 = vdwg.mxu0
  %v132 = vadd.f32 %v72, %v130
  %v133 = vtanh.pop %v132
  %134 = vmatpush.msra.mxu0 %v110
  %135 = vmatpush.msra.mxu0 %v109
  %136 = vmatpush.msra.mxu0 %v108
  %137 = vmatpush.msra.mxu0 %v107
  %138 = vmatpush.msra.mxu0 %v106
  %139 = vmatpush.msra.mxu0 %v105
  %140 = vmatpush.msra.mxu0 %v104
  %141 = vmatpush.msra.mxu0 %v103
  %142 = vmatpush.msra.mxu0 %v102
  %143 = vmatpush.msra.mxu0 %v101
  %144 = vmatpush.msra.mxu0 %v100
  %145 = vmatpush.msra.mxu0 %v99
  %146 = vmatpush.msra.mxu0 %v98
  %147 = vmatpush.msra.mxu0 %v97
  %148 = vmatpush.msra.mxu0 %v96
  %149 = vmatpush.msra.mxu0 %v95
  %150 = vmatmul.f32.gmra.mxu0 %v133
  %v151 = vpop.f32.mrf.mxu0
  %v152 = vadd.f32 0.0, %v151
  %153 = vdwg.mxu0
  %v154 = vadd.f32 %v75, %v152
  %v155 = vtanh.pop %v154
  %156 = vmatpush.msra.mxu0 %v110
  %157 = vmatpush.msra.mxu0 %v109
  %158 = vmatpush.msra.mxu0 %v108
  %159 = vmatpush.msra.mxu0 %v107
  %160 = vmatpush.msra.mxu0 %v106
  %161 = vmatpush.msra.mxu0 %v105
  %162 = vmatpush.msra.mxu0 %v104
  %163 = vmatpush.msra.mxu0 %v103
  %164 = vmatpush.msra.mxu0 %v102
  %165 = vmatpush.msra.mxu0 %v101
  %166 = vmatpush.msra.mxu0 %v100
  %167 = vmatpush.msra.mxu0 %v99
  %168 = vmatpush.msra.mxu0 %v98
  %169 = vmatpush.msra.mxu0 %v97
  %170 = vmatpush.msra.mxu0 %v96
  %171 = vmatpush.msra.mxu0 %v95
  %172 = vmatmul.f32.gmra.mxu0 %v155
  %v173 = vpop.f32.mrf.mxu0
  %v174 = vadd.f32 0.0, %v173
  %175 = vdwg.mxu0
  %v176 = vadd.f32 %v78, %v174
  %v177 = vtanh.pop %v176
  %178 = vmatpush.msra.mxu0 %v110
  %179 = vmatpush.msra.mxu0 %v109
  %180 = vmatpush.msra.mxu0 %v108
  %181 = vmatpush.msra.mxu0 %v107
  %182 = vmatpush.msra.mxu0 %v106
  %183 = vmatpush.msra.mxu0 %v105
  %184 = vmatpush.msra.mxu0 %v104
  %185 = vmatpush.msra.mxu0 %v103
  %186 = vmatpush.msra.mxu0 %v102
  %187 = vmatpush.msra.mxu0 %v101
  %188 = vmatpush.msra.mxu0 %v100
  %189 = vmatpush.msra.mxu0 %v99
  %190 = vmatpush.msra.mxu0 %v98
  %191 = vmatpush.msra.mxu0 %v97
  %192 = vmatpush.msra.mxu0 %v96
  %193 = vmatpush.msra.mxu0 %v95
  %194 = vmatmul.f32.gmra.mxu0 %v177
  %v195 = vpop.f32.mrf.mxu0
  %v196 = vadd.f32 0.0, %v195
  %197 = vdwg.mxu0
  %v198 = vadd.f32 %v81, %v196
  %v199 = vtanh.pop %v198
  %200 = vmatpush.msra.mxu0 %v110
  %201 = vmatpush.msra.mxu0 %v109
  %202 = vmatpush.msra.mxu0 %v108
  %203 = vmatpush.msra.mxu0 %v107
  %204 = vmatpush.msra.mxu0 %v106
  %205 = vmatpush.msra.mxu0 %v105
  %206 = vmatpush.msra.mxu0 %v104
  %207 = vmatpush.msra.mxu0 %v103
  %208 = vmatpush.msra.mxu0 %v102
  %209 = vmatpush.msra.mxu0 %v101
  %210 = vmatpush.msra.mxu0 %v100
  %211 = vmatpush.msra.mxu0 %v99
  %212 = vmatpush.msra.mxu0 %v98
  %213 = vmatpush.msra.mxu0 %v97
  %214 = vmatpush.msra.mxu0 %v96
  %215 = vmatpush.msra.mxu0 %v95
  %216 = vmatmul.f32.gmra.mxu0 %v199
  %v217 = vpop.f32.mrf.mxu0
  %v218 = vadd.f32 0.0, %v217
  %219 = vdwg.mxu0
  %v220 = vadd.f32 %v84, %v218
  %v221 = vtanh.pop %v220
  %222 = vmatpush.msra.mxu0 %v110
  %223 = vmatpush.msra.mxu0 %v109
  %224 = vmatpush.msra.mxu0 %v108
  %225 = vmatpush.msra.mxu0 %v107
  %226 = vmatpush.msra.mxu0 %v106
  %227 = vmatpush.msra.mxu0 %v105
  %228 = vmatpush.msra.mxu0 %v104
  %229 = vmatpush.msra.mxu0 %v103
  %230 = vmatpush.msra.mxu0 %v102
  %231 = vmatpush.msra.mxu0 %v101
  %232 = vmatpush.msra.mxu0 %v100
  %233 = vmatpush.msra.mxu0 %v99
  %234 = vmatpush.msra.mxu0 %v98
  %235 = vmatpush.msra.mxu0 %v97
  %236 = vmatpush.msra.mxu0 %v96
  %237 = vmatpush.msra.mxu0 %v95
  %238 = vmatmul.f32.gmra.mxu0 %v221
  %v239 = vpop.f32.mrf.mxu0
  %v240 = vadd.f32 0.0, %v239
  %241 = vdwg.mxu0
  %v242 = vadd.f32 %v87, %v240
  %v243 = vtanh.pop %v242
  %244 = vmatpush.msra.mxu0 %v110
  %245 = vmatpush.msra.mxu0 %v109
  %246 = vmatpush.msra.mxu0 %v108
  %247 = vmatpush.msra.mxu0 %v107
  %248 = vmatpush.msra.mxu0 %v106
  %249 = vmatpush.msra.mxu0 %v105
  %250 = vmatpush.msra.mxu0 %v104
  %251 = vmatpush.msra.mxu0 %v103
  %252 = vmatpush.msra.mxu0 %v102
  %253 = vmatpush.msra.mxu0 %v101
  %254 = vmatpush.msra.mxu0 %v100
  %255 = vmatpush.msra.mxu0 %v99
  %256 = vmatpush.msra.mxu0 %v98
  %257 = vmatpush.msra.mxu0 %v97
  %258 = vmatpush.msra.mxu0 %v96
  %259 = vmatpush.msra.mxu0 %v95
  %260 = vmatmul.f32.gmra.mxu0 %v243
  %v261 = vpop.f32.mrf.mxu0
  %v262 = vadd.f32 0.0, %v261
  %263 = vdwg.mxu0
  %v264 = vadd.f32 %v90, %v262
  %v265 = vtanh.pop %v264
  %266 = vmatpush.msra.mxu0 %v110
  %267 = vmatpush.msra.mxu0 %v109
  %268 = vmatpush.msra.mxu0 %v108
  %269 = vmatpush.msra.mxu0 %v107
  %270 = vmatpush.msra.mxu0 %v106
  %271 = vmatpush.msra.mxu0 %v105
  %272 = vmatpush.msra.mxu0 %v104
  %273 = vmatpush.msra.mxu0 %v103
  %274 = vmatpush.msra.mxu0 %v102
  %275 = vmatpush.msra.mxu0 %v101
  %276 = vmatpush.msra.mxu0 %v100
  %277 = vmatpush.msra.mxu0 %v99
  %278 = vmatpush.msra.mxu0 %v98
  %279 = vmatpush.msra.mxu0 %v97
  %280 = vmatpush.msra.mxu0 %v96
  %281 = vmatpush.msra.mxu0 %v95
  %282 = vmatmul.f32.gmra.mxu0 %v265
  %v283 = vpop.f32.mrf.mxu0
  %v284 = vadd.f32 0.0, %v283
  %285 = vdwg.mxu0
  %v286 = vadd.f32 %v93, %v284
  %v287 = vtanh.pop %v286
  %v288 = vld [vmem:[%s5] sm:$0xff]
  %v289 = vld [vmem:[%s5 + $0x8] sm:$0xff]
  %v290 = vld [vmem:[%s5 + $0x10] sm:$0xff]
  %v291 = vld [vmem:[%s5 + $0x18] sm:$0xff]
  %v292 = vld [vmem:[%s5 + $0x20] sm:$0xff]
  %v293 = vld [vmem:[%s5 + $0x28] sm:$0xff]
  %v294 = vld [vmem:[%s5 + $0x30] sm:$0xff]
  %v295 = vld [vmem:[%s5 + $0x38] sm:$0xff]
  %v296 = vld [vmem:[%s5 + $0x40] sm:$0xff]
  %v297 = vld [vmem:[%s5 + $0x48] sm:$0xff]
  %v298 = vld [vmem:[%s5 + $0x50] sm:$0xff]
  %v299 = vld [vmem:[%s5 + $0x58] sm:$0xff]
  %v300 = vld [vmem:[%s5 + $0x60] sm:$0xff]
  %v301 = vld [vmem:[%s5 + $0x68] sm:$0xff]
  %v302 = vld [vmem:[%s5 + $0x70] sm:$0xff]
  %v303 = vld [vmem:[%s5 + $0x78] sm:$0xff]
  %v304 = vld [vmem:[%s6] sm:$0x1]
  %v306 = vperm.slane %v304, 0
  %308 = vmatpush.msra.mxu0 %v303
  %309 = vmatpush.msra.mxu0 %v302
  %310 = vmatpush.msra.mxu0 %v301
  %311 = vmatpush.msra.mxu0 %v300
  %312 = vmatpush.msra.mxu0 %v299
  %313 = vmatpush.msra.mxu0 %v298
  %314 = vmatpush.msra.mxu0 %v297
  %315 = vmatpush.msra.mxu0 %v296
  %316 = vmatpush.msra.mxu0 %v295
  %317 = vmatpush.msra.mxu0 %v294
  %318 = vmatpush.msra.mxu0 %v293
  %319 = vmatpush.msra.mxu0 %v292
  %320 = vmatpush.msra.mxu0 %v291
  %321 = vmatpush.msra.mxu0 %v290
  %322 = vmatpush.msra.mxu0 %v289
  %323 = vmatpush.msra.mxu0 %v288
  %324 = vmatmul.f32.gmra.mxu0 %v133
  %v325 = vpop.f32.mrf.mxu0
  %v326 = vadd.f32 %v306, %v325
  %327 = vmatmul.f32.gmra.mxu0 %v155
  %v328 = vpop.f32.mrf.mxu0
  %v329 = vadd.f32 %v306, %v328
  %330 = vmatmul.f32.gmra.mxu0 %v177
  %v331 = vpop.f32.mrf.mxu0
  %v332 = vadd.f32 %v306, %v331
  %333 = vmatmul.f32.gmra.mxu0 %v199
  %v334 = vpop.f32.mrf.mxu0
  %v335 = vadd.f32 %v306, %v334
  %336 = vmatmul.f32.gmra.mxu0 %v221
  %v337 = vpop.f32.mrf.mxu0
  %v338 = vadd.f32 %v306, %v337
  %339 = vmatmul.f32.gmra.mxu0 %v243
  %v340 = vpop.f32.mrf.mxu0
  %v341 = vadd.f32 %v306, %v340
  %342 = vmatmul.f32.gmra.mxu0 %v265
  %v343 = vpop.f32.mrf.mxu0
  %v344 = vadd.f32 %v306, %v343
  %345 = vmatmul.f32.gmra.mxu0 %v287
  %v346 = vpop.f32.mrf.mxu0
  %v347 = vadd.f32 %v306, %v346
  %348 = vdwg.mxu0
  %v349 = vmax.f32 %v326, 0.0
  %v350 = vmax.f32 %v329, 0.0
  %v351 = vmax.f32 %v332, 0.0
  %v352 = vmax.f32 %v335, 0.0
  %v353 = vmax.f32 %v338, 0.0
  %v354 = vmax.f32 %v341, 0.0
  %v355 = vmax.f32 %v344, 0.0
  %v356 = vmax.f32 %v347, 0.0
  %357 = vst [vmem:[%s7] sm:$0xff] %v349
  %358 = vst [vmem:[%s7 + $0x8] sm:$0xff] %v350
  %359 = vst [vmem:[%s7 + $0x10] sm:$0xff] %v351
  %360 = vst [vmem:[%s7 + $0x18] sm:$0xff] %v352
  %361 = vst [vmem:[%s7 + $0x20] sm:$0xff] %v353
  %362 = vst [vmem:[%s7 + $0x28] sm:$0xff] %v354
  %363 = vst [vmem:[%s7 + $0x30] sm:$0xff] %v355
  %364 = vst [vmem:[%s7 + $0x38] sm:$0xff] %v356
  // Predicated region
  $region30: #{rnn_forward.1} parent=0 // pred_check
    _
  $region31: #{rnn_forward.1} parent=0 // pred_check_branch
    %366 = sbr.rel (0) target = $region33
  $region32: #{rnn_forward.1} parent=0 // pred_region
    _
  $region33: #{rnn_forward.1} parent=0 // pred_fallthru
    _
  // Predicated region
  $region34: #{rnn_forward.1} parent=0 // pred_check
    _
  $region35: #{rnn_forward.1} parent=0 // pred_check_branch
    %368 = sbr.rel (0) target = $region37
  $region36: #{rnn_forward.1} parent=0 // pred_region
    _
  $region37: #{rnn_forward.1} parent=0 // pred_fallthru
    _

</llo_original>
